<compile_context>
chip_gen: v7x
topology: tpu7x:2x2x1
jax: 0.10.0
libtpu: 0.0.40
codegen_flags: <defaults>
</compile_context>

<pallas_src>
import jax
import jax.numpy as jnp
from jax import lax
from jax.experimental import pallas as pl
from jax.experimental.pallas import tpu as pltpu

EPS = 1e-8                 # torch cosine_similarity eps
ALPHA0, ALPHA1 = 0.4, 0.6  # FocalLoss(alpha=0.4) -> Tensor([0.4, 0.6]), gathered at label
W0, W1, W2 = 1.0, 0.3, 0.1


def _gather_prob(y, label):
    """y[i, label_i] as an (N, 1) column (torch.gather(dim=1, label) semantics)."""
    n, c = y.shape
    if c == 2:
        # Binary: plain VPU select, no iota / one-hot / cross-lane reduce.
        return jnp.where(label == 1, y[:, 1:2], y[:, 0:1])
    # Generic static fallback for C > 2.  (Note: the baked binary alpha below
    # still assumes labels in {0, 1}, exactly like FocalLoss(alpha=0.4).)
    cls_iota = lax.broadcasted_iota(jnp.int32, (n, c), 1)
    onehot = (cls_iota == label).astype(y.dtype)
    return jnp.sum(onehot * y, axis=1, keepdims=True)


def _loss_kernel(y_ref, y1_ref, y2_ref, f1_ref, f2_ref, label_ref, out_ref):
    y = y_ref[...].astype(jnp.float32)          # (N, C)
    y1 = y1_ref[...].astype(jnp.float32)        # (N, C)
    y2 = y2_ref[...].astype(jnp.float32)        # (N, C)
    f1 = f1_ref[...].astype(jnp.float32)        # (N, D)
    f2 = f2_ref[...].astype(jnp.float32)        # (N, D)
    label = label_ref[...]                      # (N, 1) int32

    n = y.shape[0]
    inv_n = jnp.float32(1.0 / n)

    # Gathered probabilities for [focal, nll1, nll2]; single fused log (one EUP
    # push of 3N elements instead of three short ones).
    pt = _gather_prob(y, label)                              # (N, 1)
    pt_all = jnp.concatenate([pt, _gather_prob(y1, label),
                              _gather_prob(y2, label)], axis=1)   # (N, 3)
    log_all = jnp.log(pt_all)                                # (N, 3)
    logpt = log_all[:, 0:1]

    # ---- FocalLoss(alpha=0.4, gamma=2, size_average=True) on probs `y` ----
    # alpha.gather(0, target) with alpha = [0.4, 0.6] -> binary select.
    at = jnp.where(label == 1, jnp.float32(ALPHA1), jnp.float32(ALPHA0))
    omp = 1.0 - pt
    focal_rows = -(omp * omp) * logpt * at                   # (N, 1), gamma == 2

    # ---- NLLLoss(y_i.log(), label) per-row terms (both weighted by W2) ----
    nll_rows = -(log_all[:, 1:2] + log_all[:, 2:3])          # (N, 1)

    # ---- FeatureOrthogonalLoss: |mean_i cos(f1_i, f2_i)| (dim=1, eps=1e-8) ----
    dot = jnp.sum(f1 * f2, axis=1, keepdims=True)
    ss1 = jnp.sum(f1 * f1, axis=1, keepdims=True)
    ss2 = jnp.sum(f2 * f2, axis=1, keepdims=True)
    # 1/max(||f||, eps) == rsqrt(max(||f||^2, eps^2)); EUP rsqrt, no divide.
    inv = lax.rsqrt(jnp.maximum(ss1, EPS * EPS)) * lax.rsqrt(jnp.maximum(ss2, EPS * EPS))
    ortho = jnp.abs(jnp.sum(dot * inv)) * inv_n              # |mean| == |sum|/N

    # Single fused weighted reduction for focal + nll1 + nll2.
    cls = jnp.sum(W0 * focal_rows + W2 * nll_rows) * inv_n
    out_ref[0, 0] = cls + W1 * ortho


def loss_pallas(y, f1, f2, y1, y2, label):
    """Pallas equivalent of Loss()(y, f1, f2, y1, y2, label). Returns a scalar."""
    label2d = jnp.asarray(label, jnp.int32).reshape(-1, 1)   # (N, 1), 32 B
    out = pl.pallas_call(
        _loss_kernel,
        out_shape=jax.ShapeDtypeStruct((1, 1), jnp.float32),
        in_specs=[pl.BlockSpec(memory_space=pltpu.MemorySpace.VMEM)] * 6,
        out_specs=pl.BlockSpec(memory_space=pltpu.MemorySpace.SMEM),
    )(y, y1, y2, f1, f2, label2d)
    return out[0, 0]


def _loss_reference(y, f1, f2, y1, y2, label):
    """Pure-JAX reference mirroring the PyTorch forward."""
    onehot = jax.nn.one_hot(label, y.shape[1], dtype=jnp.float32)
    alpha = jnp.asarray([ALPHA0, ALPHA1], dtype=jnp.float32)

    logpt = jnp.sum(onehot * jnp.log(y), axis=1)
    pt = jnp.exp(logpt)
    at = alpha[label]
    focal = jnp.mean(-((1.0 - pt) ** 2) * logpt * at)

    dot = jnp.sum(f1 * f2, axis=1)
    n1 = jnp.maximum(jnp.linalg.norm(f1, axis=1), EPS)
    n2 = jnp.maximum(jnp.linalg.norm(f2, axis=1), EPS)
    ortho = jnp.abs(jnp.mean(dot / (n1 * n2)))

    nll1 = jnp.mean(-jnp.sum(onehot * jnp.log(y1), axis=1))
    nll2 = jnp.mean(-jnp.sum(onehot * jnp.log(y2), axis=1))
    return W0 * focal + W1 * ortho + W2 * nll1 + W2 * nll2


if __name__ == "__main__":
    N, C, D = 8, 2, 32   # alpha has 2 entries -> binary classification
    key = jax.random.PRNGKey(0)
    k1, k2, k3, k4, k5, k6 = jax.random.split(key, 6)

    # Probability inputs (the module calls .log() on them / FocalLoss logs them).
    y = jax.nn.softmax(jax.random.normal(k1, (N, C), dtype=jnp.float32), axis=-1)
    y1 = jax.nn.softmax(jax.random.normal(k2, (N, C), dtype=jnp.float32), axis=-1)
    y2 = jax.nn.softmax(jax.random.normal(k3, (N, C), dtype=jnp.float32), axis=-1)
    f1 = jax.random.normal(k4, (N, D), dtype=jnp.float32)
    f2 = jax.random.normal(k5, (N, D), dtype=jnp.float32)
    label = jax.random.randint(k6, (N,), 0, C, dtype=jnp.int32)

    out = loss_pallas(y, f1, f2, y1, y2, label)
    jax.block_until_ready(out)

    ref = _loss_reference(y, f1, f2, y1, y2, label)
    assert jnp.allclose(out, ref, rtol=1e-5, atol=1e-5), (out, ref)

    print("KERNEL_OK")
</pallas_src>

<mosaic_0001>
module attributes {stable_mosaic.version = 11 : i64} {
  func.func @_loss_kernel(%arg0: memref<8x2xf32, #tpu.memory_space<vmem>>, %arg1: memref<8x2xf32, #tpu.memory_space<vmem>>, %arg2: memref<8x2xf32, #tpu.memory_space<vmem>>, %arg3: memref<8x32xf32, #tpu.memory_space<vmem>>, %arg4: memref<8x32xf32, #tpu.memory_space<vmem>>, %arg5: memref<8x1xi32, #tpu.memory_space<vmem>>, %arg6: memref<1x1xf32, #tpu.memory_space<smem>>) attributes {dimension_semantics = [], scalar_prefetch = 0 : i64, scratch_operands = 0 : i64, tpu.core_type = #tpu.core_type<tc>} {
    %c0 = arith.constant 0 : index
    %c0_0 = arith.constant 0 : index
    %0 = vector.load %arg0[%c0, %c0_0] : memref<8x2xf32, #tpu.memory_space<vmem>>, vector<8x2xf32>
    %c0_1 = arith.constant 0 : index
    %c0_2 = arith.constant 0 : index
    %1 = vector.load %arg1[%c0_1, %c0_2] : memref<8x2xf32, #tpu.memory_space<vmem>>, vector<8x2xf32>
    %c0_3 = arith.constant 0 : index
    %c0_4 = arith.constant 0 : index
    %2 = vector.load %arg2[%c0_3, %c0_4] : memref<8x2xf32, #tpu.memory_space<vmem>>, vector<8x2xf32>
    %c0_5 = arith.constant 0 : index
    %c0_6 = arith.constant 0 : index
    %3 = vector.load %arg3[%c0_5, %c0_6] : memref<8x32xf32, #tpu.memory_space<vmem>>, vector<8x32xf32>
    %c0_7 = arith.constant 0 : index
    %c0_8 = arith.constant 0 : index
    %4 = vector.load %arg4[%c0_7, %c0_8] : memref<8x32xf32, #tpu.memory_space<vmem>>, vector<8x32xf32>
    %c0_9 = arith.constant 0 : index
    %c0_10 = arith.constant 0 : index
    %5 = vector.load %arg5[%c0_9, %c0_10] : memref<8x1xi32, #tpu.memory_space<vmem>>, vector<8x1xi32>
    %c1_i32 = arith.constant 1 : i32
    %6 = vector.broadcast %c1_i32 : i32 to vector<8x1xi32>
    %7 = arith.cmpi eq, %5, %6 : vector<8x1xi32>
    %8 = vector.extract_strided_slice %0 {offsets = [0, 1], sizes = [8, 1], strides = [1, 1]} : vector<8x2xf32> to vector<8x1xf32>
    %9 = vector.extract_strided_slice %0 {offsets = [0, 0], sizes = [8, 1], strides = [1, 1]} : vector<8x2xf32> to vector<8x1xf32>
    %10 = arith.select %7, %8, %9 : vector<8x1xi1>, vector<8x1xf32>
    %c1_i32_11 = arith.constant 1 : i32
    %11 = vector.broadcast %c1_i32_11 : i32 to vector<8x1xi32>
    %12 = arith.cmpi eq, %5, %11 : vector<8x1xi32>
    %13 = vector.extract_strided_slice %1 {offsets = [0, 1], sizes = [8, 1], strides = [1, 1]} : vector<8x2xf32> to vector<8x1xf32>
    %14 = vector.extract_strided_slice %1 {offsets = [0, 0], sizes = [8, 1], strides = [1, 1]} : vector<8x2xf32> to vector<8x1xf32>
    %15 = arith.select %12, %13, %14 : vector<8x1xi1>, vector<8x1xf32>
    %c1_i32_12 = arith.constant 1 : i32
    %16 = vector.broadcast %c1_i32_12 : i32 to vector<8x1xi32>
    %17 = arith.cmpi eq, %5, %16 : vector<8x1xi32>
    %18 = vector.extract_strided_slice %2 {offsets = [0, 1], sizes = [8, 1], strides = [1, 1]} : vector<8x2xf32> to vector<8x1xf32>
    %19 = vector.extract_strided_slice %2 {offsets = [0, 0], sizes = [8, 1], strides = [1, 1]} : vector<8x2xf32> to vector<8x1xf32>
    %20 = arith.select %17, %18, %19 : vector<8x1xi1>, vector<8x1xf32>
    %21 = tpu.concatenate %10, %15, %20 in 1 : vector<8x1xf32>, vector<8x1xf32>, vector<8x1xf32> -> vector<8x3xf32>
    %22 = math.log %21 : vector<8x3xf32>
    %23 = vector.extract_strided_slice %22 {offsets = [0, 0], sizes = [8, 1], strides = [1, 1]} : vector<8x3xf32> to vector<8x1xf32>
    %c1_i32_13 = arith.constant 1 : i32
    %24 = vector.broadcast %c1_i32_13 : i32 to vector<8x1xi32>
    %25 = arith.cmpi eq, %5, %24 : vector<8x1xi32>
    %cst = arith.constant 6.000000e-01 : f32
    %cst_14 = arith.constant 4.000000e-01 : f32
    %26 = vector.broadcast %cst : f32 to vector<8x1xf32>
    %27 = vector.broadcast %cst_14 : f32 to vector<8x1xf32>
    %28 = arith.select %25, %26, %27 : vector<8x1xi1>, vector<8x1xf32>
    %cst_15 = arith.constant 1.000000e+00 : f32
    %29 = vector.broadcast %cst_15 : f32 to vector<8x1xf32>
    %30 = arith.subf %29, %10 : vector<8x1xf32>
    %31 = arith.mulf %30, %30 : vector<8x1xf32>
    %cst_16 = arith.constant 0.000000e+00 : f32
    %32 = vector.broadcast %cst_16 : f32 to vector<8x1xf32>
    %33 = arith.subf %32, %31 : vector<8x1xf32>
    %34 = arith.mulf %33, %23 : vector<8x1xf32>
    %35 = arith.mulf %34, %28 : vector<8x1xf32>
    %36 = vector.extract_strided_slice %22 {offsets = [0, 1], sizes = [8, 1], strides = [1, 1]} : vector<8x3xf32> to vector<8x1xf32>
    %37 = vector.extract_strided_slice %22 {offsets = [0, 2], sizes = [8, 1], strides = [1, 1]} : vector<8x3xf32> to vector<8x1xf32>
    %38 = arith.addf %36, %37 : vector<8x1xf32>
    %cst_17 = arith.constant 0.000000e+00 : f32
    %39 = vector.broadcast %cst_17 : f32 to vector<8x1xf32>
    %40 = arith.subf %39, %38 : vector<8x1xf32>
    %41 = arith.mulf %3, %4 : vector<8x32xf32>
    %cst_18 = arith.constant dense<0.000000e+00> : vector<8xf32>
    %42 = vector.multi_reduction <add>, %41, %cst_18 [1] : vector<8x32xf32> to vector<8xf32>
    %43 = vector.shape_cast %42 : vector<8xf32> to vector<8x1xf32>
    %44 = arith.mulf %3, %3 : vector<8x32xf32>
    %cst_19 = arith.constant dense<0.000000e+00> : vector<8xf32>
    %45 = vector.multi_reduction <add>, %44, %cst_19 [1] : vector<8x32xf32> to vector<8xf32>
    %46 = vector.shape_cast %45 : vector<8xf32> to vector<8x1xf32>
    %47 = arith.mulf %4, %4 : vector<8x32xf32>
    %cst_20 = arith.constant dense<0.000000e+00> : vector<8xf32>
    %48 = vector.multi_reduction <add>, %47, %cst_20 [1] : vector<8x32xf32> to vector<8xf32>
    %49 = vector.shape_cast %48 : vector<8xf32> to vector<8x1xf32>
    %cst_21 = arith.constant 1.000000e-16 : f32
    %50 = vector.broadcast %cst_21 : f32 to vector<8x1xf32>
    %51 = arith.maximumf %46, %50 : vector<8x1xf32>
    %52 = math.rsqrt %51 : vector<8x1xf32>
    %cst_22 = arith.constant 1.000000e-16 : f32
    %53 = vector.broadcast %cst_22 : f32 to vector<8x1xf32>
    %54 = arith.maximumf %49, %53 : vector<8x1xf32>
    %55 = math.rsqrt %54 : vector<8x1xf32>
    %56 = arith.mulf %52, %55 : vector<8x1xf32>
    %57 = arith.mulf %43, %56 : vector<8x1xf32>
    %58 = vector.shape_cast %57 : vector<8x1xf32> to vector<1x8x1xf32>
    %cst_23 = arith.constant dense<0.000000e+00> : vector<1xf32>
    %59 = vector.multi_reduction <add>, %58, %cst_23 [1, 2] : vector<1x8x1xf32> to vector<1xf32>
    %60 = vector.shape_cast %59 : vector<1xf32> to vector<1x1x1xf32>
    %61 = vector.extract %60[0, 0, 0] : f32 from vector<1x1x1xf32>
    %62 = math.absf %61 : f32
    %cst_24 = arith.constant 1.250000e-01 : f32
    %63 = arith.mulf %62, %cst_24 : f32
    %cst_25 = arith.constant 1.000000e+00 : f32
    %64 = vector.broadcast %cst_25 : f32 to vector<8x1xf32>
    %65 = arith.mulf %64, %35 : vector<8x1xf32>
    %cst_26 = arith.constant 1.000000e-01 : f32
    %66 = vector.broadcast %cst_26 : f32 to vector<8x1xf32>
    %67 = arith.mulf %66, %40 : vector<8x1xf32>
    %68 = arith.addf %65, %67 : vector<8x1xf32>
    %69 = vector.shape_cast %68 : vector<8x1xf32> to vector<1x8x1xf32>
    %cst_27 = arith.constant dense<0.000000e+00> : vector<1xf32>
    %70 = vector.multi_reduction <add>, %69, %cst_27 [1, 2] : vector<1x8x1xf32> to vector<1xf32>
    %71 = vector.shape_cast %70 : vector<1xf32> to vector<1x1x1xf32>
    %72 = vector.extract %71[0, 0, 0] : f32 from vector<1x1x1xf32>
    %cst_28 = arith.constant 1.250000e-01 : f32
    %73 = arith.mulf %72, %cst_28 : f32
    %cst_29 = arith.constant 3.000000e-01 : f32
    %74 = arith.mulf %cst_29, %63 : f32
    %75 = arith.addf %73, %74 : f32
    %c0_30 = arith.constant 0 : index
    %c0_31 = arith.constant 0 : index
    %76 = memref.load %arg6[%c0_30, %c0_31] : memref<1x1xf32, #tpu.memory_space<smem>>
    memref.store %75, %arg6[%c0_30, %c0_31] : memref<1x1xf32, #tpu.memory_space<smem>>
    return
  }
}

</mosaic_0001>

<llo_original>
// kernel: tpu_custom_call.1
$region0: #{tpu_custom_call.1}
  #allocation0 [shape = 'u32[]', space=smem, size = 0x4, offset = 0x4, fixed_abs, tag = 'smem constant byte address 0x4 - core index']
  #allocation1 [shape = 'u32[144,128]{1,0:T(1,128)}', space=vmem, size = 0x12000, scoped, tag = 'internal scratch']
  %s0 = inlined_call_operand.vmem [shape: f32[8,2], index: 0, kind: input, shape index: {}]
  %s1 = inlined_call_operand.vmem [shape: f32[8,2], index: 1, kind: input, shape index: {}]
  %s2 = inlined_call_operand.vmem [shape: f32[8,2], index: 2, kind: input, shape index: {}]
  %s3 = inlined_call_operand.vmem [shape: f32[8,32], index: 3, kind: input, shape index: {}]
  %s4 = inlined_call_operand.vmem [shape: f32[8,32], index: 4, kind: input, shape index: {}]
  %s5 = inlined_call_operand.vmem [shape: s32[8,1], index: 5, kind: input, shape index: {}]
  %s6 = inlined_call_operand.hbm [shape: f32[1,1], index: 6, kind: output, shape index: {}]
  %s7 = sld [smem:[#allocation0]]
  $region34: #{tpu_custom_call.1} parent=0
    _
  %s9 = ssub.s32 1, %s7
  %s10 = scalar_select 0, %s9, %s7
  $region1: #{tpu_custom_call.1} parent=0
    #allocation2 [shape = 'u8[512]{0}', space=smem, size = 0x200, scoped, tag = 'output window, operand 0, single buffered']
    #allocation3 [shape = 's32[1]{0}', space=sflag, size = 0x4, scoped, tag = 'scoped memory for tpu_custom_call.1']
    %11 = vsyncpa [#allocation3], 0
    // Predicated region
    $region2: #{tpu_custom_call.1} parent=1 // pred_check
      _
    $region3: #{tpu_custom_call.1} parent=1 // pred_check_branch
      %13 = sbr.rel (0) target = $region5
    $region4: #{tpu_custom_call.1} parent=1 // pred_region
      _
    $region5: #{tpu_custom_call.1} parent=1 // pred_fallthru
      _
    // Predicated region
    $region6: #{tpu_custom_call.1} parent=1 // pred_check
      _
    $region7: #{tpu_custom_call.1} parent=1 // pred_check_branch
      %15 = sbr.rel (0) target = $region9
    $region8: #{tpu_custom_call.1} parent=1 // pred_region
      _
    $region9: #{tpu_custom_call.1} parent=1 // pred_fallthru
      _
    // Predicated region
    $region10: #{tpu_custom_call.1} parent=1 // pred_check
      _
    $region11: #{tpu_custom_call.1} parent=1 // pred_check_branch
      %17 = sbr.rel (0) target = $region13
    $region12: #{tpu_custom_call.1} parent=1 // pred_region
      _
    $region13: #{tpu_custom_call.1} parent=1 // pred_fallthru
      _
    // Predicated region
    $region14: #{tpu_custom_call.1} parent=1 // pred_check
      _
    $region15: #{tpu_custom_call.1} parent=1 // pred_check_branch
      %19 = sbr.rel (0) target = $region17
    $region16: #{tpu_custom_call.1} parent=1 // pred_region
      _
    $region17: #{tpu_custom_call.1} parent=1 // pred_fallthru
      _
    // Predicated region
    $region18: #{tpu_custom_call.1} parent=1 // pred_check
      _
    $region19: #{tpu_custom_call.1} parent=1 // pred_check_branch
      %21 = sbr.rel (0) target = $region21
    $region20: #{tpu_custom_call.1} parent=1 // pred_region
      _
    $region21: #{tpu_custom_call.1} parent=1 // pred_fallthru
      _
    // Predicated region
    $region22: #{tpu_custom_call.1} parent=1 // pred_check
      _
    $region23: #{tpu_custom_call.1} parent=1 // pred_check_branch
      %23 = sbr.rel (0) target = $region25
    $region24: #{tpu_custom_call.1} parent=1 // pred_region
      _
    $region25: #{tpu_custom_call.1} parent=1 // pred_fallthru
      _
    %v24 = vld [vmem:[%s0] sm:$0xff]
    %v25 = vld [vmem:[%s1] sm:$0xff]
    %v26 = vld [vmem:[%s2] sm:$0xff]
    %v27 = vld [vmem:[%s3] sm:$0xff]
    %v28 = vld [vmem:[%s4] sm:$0xff]
    %v29 = vld [vmem:[%s5] sm:$0xff]
    %vm30 = vcmp.eq.s32.totalorder %v29, 1
    %32 = vrot.lane.b32.xlu0 %v24, 127
    %v33 = vpop.permute.xlu0 %32
    %v35 = vsel %vm30, %v33, %v24
    %37 = vrot.lane.b32.xlu0 %v25, 127
    %v38 = vpop.permute.xlu0 %37
    %v40 = vsel %vm30, %v38, %v25
    %42 = vrot.lane.b32.xlu0 %v26, 127
    %v43 = vpop.permute.xlu0 %42
    %v45 = vsel %vm30, %v43, %v26
    %47 = vrot.lane.b32.xlu0 %v40, 1
    %v48 = vpop.permute.xlu0 %47
    %51 = vrot.lane.b32.xlu0 %v45, 2
    %v52 = vpop.permute.xlu0 %51
    %vm54 = vcmask 7168
    %v55 = vsel %vm54, %v35, %v48
    %vm56 = vcmask 15360
    %v57 = vsel %vm56, %v55, %v52
    %v58 = vlog2.pop %v57
    %v59 = vmul.f32 %v58, 0.6931472
    %v60 = vsel %vm30, 0.6, 0.4
    %v61 = vsub.f32 1.0, %v35
    %v62 = vmul.f32 %v61, %v61
    %v63 = vsub.f32 0.0, %v62
    %v64 = vmul.f32 %v63, %v59
    %v65 = vmul.f32 %v64, %v60
    %67 = vrot.lane.b32.xlu0 %v59, 127
    %v68 = vpop.permute.xlu0 %67
    %v70 = vadd.f32 %v59, %v68
    %v71 = vsub.f32 0.0, %v70
    %v72 = vmul.f32 %v27, %v28
    %vm73 = vcmask 261120
    %v74 = vsel %vm73, %v72, 0.0
    %75 = vadd.xlane.f32.xlu0 %v74
    %v76 = vpop.xlane.xlu0 %75
    %v77 = vmul.f32 %v27, %v27
    %v78 = vsel %vm73, %v77, 0.0
    %79 = vadd.xlane.f32.xlu0 %v78
    %v80 = vpop.xlane.xlu0 %79
    %v81 = vmul.f32 %v28, %v28
    %v82 = vsel %vm73, %v81, 0.0
    %83 = vadd.xlane.f32.xlu0 %v82
    %v84 = vpop.xlane.xlu0 %83
    %v85 = vmax.f32 %v80, 1e-16
    %v86 = vrsqrt.pop %v85
    %v87 = vmax.f32 %v84, 1e-16
    %v88 = vrsqrt.pop %v87
    %v89 = vmul.f32 %v86, %v88
    %v90 = vmul.f32 %v76, %v89
    %v91 = vsel %vm54, %v90, 0.0
    %92 = vadd.xlane.f32.xlu0 %v91
    %v93 = vpop.xlane.xlu0 %92
    %v94 = vrot.slane %v93, 4
    %v95 = vadd.f32 %v93, %v94
    %v96 = vrot.slane %v95, 2
    %v97 = vadd.f32 %v95, %v96
    %v98 = vrot.slane %v97, 1
    %v99 = vadd.f32 %v97, %v98
    %s100 = vtos %v99
    %s101 = sand.u32 2147483647, %s100
    %s102 = smul.f32 %s101, 0.125
    %v103 = vmul.f32 %v71, 0.1
    %105 = vrot.lane.b32.xlu0 %v103, 127
    %v106 = vpop.permute.xlu0 %105
    %v108 = vadd.f32 %v65, %v106
    %v109 = vsel %vm54, %v108, 0.0
    %110 = vadd.xlane.f32.xlu0 %v109
    %v111 = vpop.xlane.xlu0 %110
    %v112 = vrot.slane %v111, 4
    %v113 = vadd.f32 %v111, %v112
    %v114 = vrot.slane %v113, 2
    %v115 = vadd.f32 %v113, %v114
    %v116 = vrot.slane %v115, 1
    %v117 = vadd.f32 %v115, %v116
    %s118 = vtos %v117
    %s119 = smul.f32 %s118, 0.125
    %s120 = smul.f32 %s102, 0.3
    %s121 = sadd.f32 %s119, %s120
    %s122 = scalar_lea.smem [#allocation2], 0
    %123 = sst [smem:[%s122]] %s121
    // Predicated region
    $region26: #{tpu_custom_call.1} parent=1 // pred_check
      _
    $region27: #{tpu_custom_call.1} parent=1 // pred_check_branch
      %125 = sbr.rel (0) target = $region29
    $region28: #{tpu_custom_call.1} parent=1 // pred_region
      %s127 = ssub.s32 16, 16
      %128 = vsyncadd [#allocation3], %s127
      %131 = dma.smem_to_hbm [#allocation2], 16, %s6, [#allocation3]
    $region29: #{tpu_custom_call.1} parent=1 // pred_fallthru
      _
    // Predicated region
    $region30: #{tpu_custom_call.1} parent=1 // pred_check
      _
    $region31: #{tpu_custom_call.1} parent=1 // pred_check_branch
      %133 = sbr.rel (0) target = $region33
    $region32: #{tpu_custom_call.1} parent=1 // pred_region
      %134 = dma.done [#allocation3], 16
    $region33: #{tpu_custom_call.1} parent=1 // pred_fallthru
      _
    %135 = sfence
    %136 = vsyncpa [#allocation3], 1

</llo_original>
